<compile_context>
chip_gen: v7x
topology: tpu7x:2x2x1
jax: 0.10.0
libtpu: 0.0.40
codegen_flags: <defaults>
</compile_context>

<pallas_src>
import functools

import jax
import jax.numpy as jnp
from jax.experimental import pallas as pl
from jax.experimental.pallas import tpu as pltpu


# ---------------------------------------------------------------------------
# Small helpers
# ---------------------------------------------------------------------------
def _round_up(x: int, m: int) -> int:
    return ((x + m - 1) // m) * m


def _vmem_capacity_bytes() -> int:
    """Physical VMEM of the local TPU; conservative 64 MiB (v7x) if unknown."""
    try:
        cap = int(getattr(pltpu.get_tpu_info(), "vmem_capacity_bytes", 0))
        if cap > 0:
            return cap
    except Exception:
        pass
    return 64 * 1024 * 1024


def _choose_batch_tile(batch_pad: int, cap: int = 512) -> int:
    """Largest multiple-of-8 tile that divides batch_pad, <= cap, and keeps
    grid_steps >= 2 whenever batch_pad >= 16 (megacore sharding on v7x)."""
    if batch_pad <= 8:
        return batch_pad
    limit = min(cap, batch_pad // 2)
    best, t = 8, 8
    while t <= limit:
        if batch_pad % t == 0:
            best = t
        t += 8
    return best


def _choose_feature_tile(dim: int, cap: int = 512) -> int:
    """Largest multiple-of-128 tile that divides dim and is <= cap."""
    best, t = 128, 128
    while t <= min(cap, dim):
        if dim % t == 0:
            best = t
        t += 128
    return best


# ---------------------------------------------------------------------------
# Parameter packing: done ONCE, reused across forward calls.
# ---------------------------------------------------------------------------
def pack_mlp_generator_params(params, z_dim, weight_dtype=None):
    """Zero-pad (W, b) pairs to lane-dense multiple-of-128 feature dims.

    Padding is exact: padded weight ROWS are zero, so sigmoid(0)=0.5 garbage in
    padded activation lanes contributes nothing downstream; padded output
    columns are sliced off by the wrapper.
    W is stored (in_dim, out_dim) so y = x @ W + b matches PyTorch x @ W_pt.T + b.
    """
    dims = [int(z_dim)] + [int(w.shape[1]) for (w, _) in params]
    padded = [_round_up(d, 128) for d in dims]
    weights, biases = [], []
    for i, (w, b) in enumerate(params):
        din, dout = int(w.shape[0]), int(w.shape[1])
        wd = weight_dtype if weight_dtype is not None else w.dtype
        w_p = (jnp.zeros((padded[i], padded[i + 1]), wd)
               .at[:din, :dout].set(w.astype(wd)))
        b_p = (jnp.zeros((1, padded[i + 1]), jnp.float32)
               .at[0, :dout].set(b.astype(jnp.float32)))
        weights.append(w_p)
        biases.append(b_p)
    return {"weights": tuple(weights), "biases": tuple(biases),
            "dims": tuple(dims), "padded": tuple(padded)}


# ---------------------------------------------------------------------------
# Fused MLP kernel: chained (Linear -> Sigmoid)* -> Linear, all in VMEM.
# ---------------------------------------------------------------------------
def _fused_mlp_kernel(*refs, n_layers: int):
    # refs = (z_ref, w0, b0, w1, b1, ..., w_{L-1}, b_{L-1}, o_ref)
    z_ref = refs[0]
    o_ref = refs[-1]
    wb = refs[1:-1]

    h = z_ref[...].astype(jnp.float32)
    for i in range(n_layers):
        w = wb[2 * i][...]
        b = wb[2 * i + 1][...]                     # (1, Dout_pad), broadcasts
        lhs = h if w.dtype == jnp.float32 else h.astype(w.dtype)
        h = jnp.dot(lhs, w, preferred_element_type=jnp.float32) + b
        if i != n_layers - 1:
            h = jax.nn.sigmoid(h)                  # EUP transcendental, f32
    o_ref[...] = h.astype(o_ref.dtype)


# ---------------------------------------------------------------------------
# Fallback: per-layer (M, N, K)-tiled Linear (+ optional Sigmoid).
# Used when the all-weights-resident fused path would exceed the VMEM budget.
# ---------------------------------------------------------------------------
def _linear_kernel(x_ref, w_ref, b_ref, o_ref, acc_ref, *, apply_sigmoid: bool):
    @pl.when(pl.program_id(2) == 0)
    def _():
        acc_ref[...] = jnp.zeros_like(acc_ref)

    w = w_ref[...]
    lhs = x_ref[...]
    lhs = lhs.astype(w.dtype) if w.dtype != jnp.float32 else lhs.astype(jnp.float32)
    acc_ref[...] += jnp.dot(lhs, w, preferred_element_type=jnp.float32)

    @pl.when(pl.program_id(2) == pl.num_programs(2) - 1)
    def _():
        r = acc_ref[...] + b_ref[...]              # bias + sigmoid in f32
        if apply_sigmoid:
            r = jax.nn.sigmoid(r)
        o_ref[...] = r.astype(o_ref.dtype)


def _linear_pallas(x_p, w_p, b_p, *, apply_sigmoid: bool, tm: int, vmem_limit: int):
    M, K = x_p.shape
    _, N = w_p.shape
    tk = _choose_feature_tile(K)
    tn = _choose_feature_tile(N)
    grid = (M // tm, N // tn, K // tk)
    cost = pl.CostEstimate(
        flops=2 * M * K * N,
        transcendentals=(M * N if apply_sigmoid else 0),
        bytes_accessed=int(x_p.size * x_p.dtype.itemsize
                           + w_p.size * w_p.dtype.itemsize
                           + b_p.size * b_p.dtype.itemsize
                           + M * N * 4))
    return pl.pallas_call(
        functools.partial(_linear_kernel, apply_sigmoid=apply_sigmoid),
        out_shape=jax.ShapeDtypeStruct((M, N), jnp.float32),
        grid=grid,
        in_specs=[pl.BlockSpec((tm, tk), lambda i, j, k: (i, k)),
                  pl.BlockSpec((tk, tn), lambda i, j, k: (k, j)),
                  pl.BlockSpec((1, tn), lambda i, j, k: (0, j))],
        out_specs=pl.BlockSpec((tm, tn), lambda i, j, k: (i, j)),
        scratch_shapes=[pltpu.VMEM((tm, tn), jnp.float32)],
        compiler_params=pltpu.CompilerParams(
            dimension_semantics=("parallel", "parallel", "arbitrary"),
            vmem_limit_bytes=vmem_limit),
        cost_estimate=cost,
    )(x_p, w_p, b_p)


# ---------------------------------------------------------------------------
# Forward wrapper: pad the batch, pick fused vs fallback, run, slice.
# ---------------------------------------------------------------------------
def mlp_generator_forward(z, packed, *, force_fallback: bool = False):
    """Forward pass of MLPGenerator. `packed` = pack_mlp_generator_params(...)."""
    batch, z_dim = z.shape
    dims, padded = packed["dims"], packed["padded"]
    weights, biases = packed["weights"], packed["biases"]
    n_layers = len(weights)
    assert z_dim == dims[0], (z_dim, dims)

    # Sublane-friendly batch; tile chosen to divide it exactly (no tile waste).
    batch_pad = _round_up(batch, 8)
    tm = _choose_batch_tile(batch_pad)
    grid_steps = batch_pad // tm

    z_p = jnp.zeros((batch_pad, padded[0]), z.dtype).at[:batch, :z_dim].set(z)

    # --- VMEM budgeting (v7x has only 64 MiB; budget from the real footprint) --
    w_bytes = sum(int(w.size) * w.dtype.itemsize for w in weights)
    b_bytes = sum(int(b.size) * b.dtype.itemsize for b in biases)
    act_bytes = 4 * tm * max(padded) * 4                       # live f32 activations
    io_bytes = 2 * tm * (padded[0] + padded[-1]) * z.dtype.itemsize  # dbl-buf tiles
    fused_need = w_bytes + b_bytes + act_bytes + io_bytes

    vmem_cap = _vmem_capacity_bytes()
    budget = int(vmem_cap * 0.8)
    use_fused = (not force_fallback) and (fused_need <= budget)

    out_dim, out_pad = dims[-1], padded[-1]

    if use_fused:
        vmem_limit = min(vmem_cap, max(int(fused_need * 1.5), 32 * 1024 * 1024))
        kernel = functools.partial(_fused_mlp_kernel, n_layers=n_layers)
        cost = pl.CostEstimate(
            flops=2 * batch_pad * sum(padded[i] * padded[i + 1]
                                      for i in range(n_layers)),
            transcendentals=batch_pad * sum(padded[1:-1]),
            bytes_accessed=int(batch_pad * padded[0] * z.dtype.itemsize
                               + w_bytes + b_bytes
                               + batch_pad * out_pad * z.dtype.itemsize))
        out_shape = jax.ShapeDtypeStruct((batch_pad, out_pad), z.dtype)
        operands = [z_p]
        for w_p, b_p in zip(weights, biases):
            operands.extend([w_p, b_p])

        if grid_steps == 1:
            # Tiny batch: single invocation, whole arrays resident in VMEM.
            vm = pl.BlockSpec(memory_space=pltpu.MemorySpace.VMEM)
            out_p = pl.pallas_call(
                kernel,
                out_shape=out_shape,
                in_specs=[vm] * (1 + 2 * n_layers),
                out_specs=vm,
                compiler_params=pltpu.CompilerParams(vmem_limit_bytes=vmem_limit),
                cost_estimate=cost,
            )(*operands)
        else:
            # Batch-tiled grid (>=2 steps whenever batch_pad >= 16); weights and
            # biases are VMEM-resident and single-buffered (constant index_map).
            in_specs = [pl.BlockSpec((tm, padded[0]), lambda i: (i, 0))]
            for li in range(n_layers):
                in_specs.append(pl.BlockSpec(
                    (padded[li], padded[li + 1]), lambda i: (0, 0),
                    pipeline_mode=pl.Buffered(1)))
                in_specs.append(pl.BlockSpec(
                    (1, padded[li + 1]), lambda i: (0, 0),
                    pipeline_mode=pl.Buffered(1)))
            out_specs = pl.BlockSpec((tm, out_pad), lambda i: (i, 0))
            out_p = pl.pallas_call(
                kernel,
                out_shape=out_shape,
                grid=(grid_steps,),
                in_specs=in_specs,
                out_specs=out_specs,
                compiler_params=pltpu.CompilerParams(
                    dimension_semantics=("parallel",),
                    vmem_limit_bytes=vmem_limit),
                cost_estimate=cost,
            )(*operands)
    else:
        # Weights too big to keep all layers resident: per-layer tiled kernels
        # stream weight tiles over (N, K) grid axes -> no VMEM cliff at scale.
        per_layer_vmem = min(vmem_cap, 64 * 1024 * 1024)
        h = z_p.astype(jnp.float32)
        for li in range(n_layers):
            h = _linear_pallas(h, weights[li], biases[li],
                               apply_sigmoid=(li != n_layers - 1),
                               tm=tm, vmem_limit=per_layer_vmem)
        out_p = h.astype(z.dtype)

    return out_p[:batch, :out_dim]


# ---------------------------------------------------------------------------
# Parameter construction (mirrors torch nn.Linear default init, W transposed).
# ---------------------------------------------------------------------------
def init_mlp_generator_params(key, z_dim, hidden_dims, output_dim=2,
                              dtype=jnp.float32):
    """Returns a list of (W, b) with W: (in_dim, out_dim), b: (out_dim,)."""
    params = []
    dims = [z_dim] + list(hidden_dims) + [output_dim]
    for i in range(len(dims) - 1):
        key, kw, kb = jax.random.split(key, 3)
        fan_in, fan_out = dims[i], dims[i + 1]
        bound = 1.0 / float(fan_in) ** 0.5
        w = jax.random.uniform(kw, (fan_in, fan_out), dtype,
                               minval=-bound, maxval=bound)
        b = jax.random.uniform(kb, (fan_out,), dtype,
                               minval=-bound, maxval=bound)
        params.append((w, b))
    return params


# ---------------------------------------------------------------------------
# Pure-JAX reference for the correctness check.
# ---------------------------------------------------------------------------
def mlp_generator_reference(z, params):
    h = z
    n_layers = len(params)
    for idx, (w, b) in enumerate(params):
        h = h @ w + b
        if idx != n_layers - 1:
            h = jax.nn.sigmoid(h)
    return h


if __name__ == "__main__":
    key = jax.random.PRNGKey(0)

    batch = 8
    z_dim = 32
    hidden_dims = (64, 64)
    output_dim = 2

    key, kz, kz2, kp = jax.random.split(key, 4)
    z = jax.random.normal(kz, (batch, z_dim), jnp.float32)
    params = init_mlp_generator_params(kp, z_dim, hidden_dims, output_dim)
    ref = mlp_generator_reference(z, params)

    # Pack (pad) parameters ONCE; reused by every forward call below.
    packed_f32 = pack_mlp_generator_params(params, z_dim)

    # 1) Fused single-shot path (batch fits one 8-row tile).
    out = jax.block_until_ready(mlp_generator_forward(z, packed_f32))
    assert out.shape == (batch, output_dim), out.shape
    assert jnp.allclose(out, ref, atol=1e-4, rtol=1e-4), "fused single-shot mismatch"

    # 2) Fused grid path: >=2 parallel batch tiles (megacore on v7x),
    #    single-buffered resident weight/bias specs.
    batch2 = 64
    z2 = jax.random.normal(kz2, (batch2, z_dim), jnp.float32)
    ref2 = mlp_generator_reference(z2, params)
    out2 = jax.block_until_ready(mlp_generator_forward(z2, packed_f32))
    assert out2.shape == (batch2, output_dim), out2.shape
    assert jnp.allclose(out2, ref2, atol=1e-4, rtol=1e-4), "fused grid mismatch"

    # 3) Per-layer tiled fallback (what over-VMEM-budget models would use).
    out3 = jax.block_until_ready(
        mlp_generator_forward(z, packed_f32, force_fallback=True))
    assert jnp.allclose(out3, ref, atol=1e-4, rtol=1e-4), "fallback mismatch"

    # 4) bf16-weight path (recommended at non-toy hidden dims on v6e/v7x).
    packed_bf16 = pack_mlp_generator_params(params, z_dim,
                                            weight_dtype=jnp.bfloat16)
    out4 = jax.block_until_ready(mlp_generator_forward(z, packed_bf16))
    assert jnp.allclose(out4, ref, atol=5e-2, rtol=5e-2), "bf16 mismatch"

    print("KERNEL_OK")
</pallas_src>

<mosaic_0001>
module attributes {stable_mosaic.version = 11 : i64} {
  func.func @_fused_mlp_kernel(%arg0: memref<8x128xf32, #tpu.memory_space<vmem>>, %arg1: memref<128x128xf32, #tpu.memory_space<vmem>>, %arg2: memref<1x128xf32, #tpu.memory_space<vmem>>, %arg3: memref<128x128xf32, #tpu.memory_space<vmem>>, %arg4: memref<1x128xf32, #tpu.memory_space<vmem>>, %arg5: memref<128x128xf32, #tpu.memory_space<vmem>>, %arg6: memref<1x128xf32, #tpu.memory_space<vmem>>, %arg7: memref<8x128xf32, #tpu.memory_space<vmem>>) attributes {dimension_semantics = [], scalar_prefetch = 0 : i64, scratch_operands = 0 : i64, tpu.core_type = #tpu.core_type<tc>} {
    %c0 = arith.constant 0 : index
    %c0_0 = arith.constant 0 : index
    %0 = vector.load %arg0[%c0, %c0_0] : memref<8x128xf32, #tpu.memory_space<vmem>>, vector<8x128xf32>
    %c0_1 = arith.constant 0 : index
    %c0_2 = arith.constant 0 : index
    %1 = vector.load %arg1[%c0_1, %c0_2] : memref<128x128xf32, #tpu.memory_space<vmem>>, vector<128x128xf32>
    %c0_3 = arith.constant 0 : index
    %c0_4 = arith.constant 0 : index
    %2 = vector.load %arg2[%c0_3, %c0_4] : memref<1x128xf32, #tpu.memory_space<vmem>>, vector<1x128xf32>
    %cst = arith.constant dense<0.000000e+00> : vector<8x128xf32>
    %3 = tpu.matmul %0, %1, %cst {dimension_numbers = #tpu.dot_dimension_numbers<[1], [0], [0], [1], [0, 0, 1, 1], [], []>} : vector<8x128xf32>, vector<128x128xf32>, vector<8x128xf32> -> vector<8x128xf32>
    %4 = vector.broadcast %2 : vector<1x128xf32> to vector<8x128xf32>
    %5 = arith.addf %3, %4 : vector<8x128xf32>
    %6 = arith.negf %5 : vector<8x128xf32>
    %7 = math.exp %6 : vector<8x128xf32>
    %cst_5 = arith.constant 1.000000e+00 : f32
    %8 = vector.broadcast %cst_5 : f32 to vector<8x128xf32>
    %9 = arith.addf %8, %7 : vector<8x128xf32>
    %10 = arith.divf %8, %9 : vector<8x128xf32>
    %c0_6 = arith.constant 0 : index
    %c0_7 = arith.constant 0 : index
    %11 = vector.load %arg3[%c0_6, %c0_7] : memref<128x128xf32, #tpu.memory_space<vmem>>, vector<128x128xf32>
    %c0_8 = arith.constant 0 : index
    %c0_9 = arith.constant 0 : index
    %12 = vector.load %arg4[%c0_8, %c0_9] : memref<1x128xf32, #tpu.memory_space<vmem>>, vector<1x128xf32>
    %cst_10 = arith.constant dense<0.000000e+00> : vector<8x128xf32>
    %13 = tpu.matmul %10, %11, %cst_10 {dimension_numbers = #tpu.dot_dimension_numbers<[1], [0], [0], [1], [0, 0, 1, 1], [], []>} : vector<8x128xf32>, vector<128x128xf32>, vector<8x128xf32> -> vector<8x128xf32>
    %14 = vector.broadcast %12 : vector<1x128xf32> to vector<8x128xf32>
    %15 = arith.addf %13, %14 : vector<8x128xf32>
    %16 = arith.negf %15 : vector<8x128xf32>
    %17 = math.exp %16 : vector<8x128xf32>
    %cst_11 = arith.constant 1.000000e+00 : f32
    %18 = vector.broadcast %cst_11 : f32 to vector<8x128xf32>
    %19 = arith.addf %18, %17 : vector<8x128xf32>
    %20 = arith.divf %18, %19 : vector<8x128xf32>
    %c0_12 = arith.constant 0 : index
    %c0_13 = arith.constant 0 : index
    %21 = vector.load %arg5[%c0_12, %c0_13] : memref<128x128xf32, #tpu.memory_space<vmem>>, vector<128x128xf32>
    %c0_14 = arith.constant 0 : index
    %c0_15 = arith.constant 0 : index
    %22 = vector.load %arg6[%c0_14, %c0_15] : memref<1x128xf32, #tpu.memory_space<vmem>>, vector<1x128xf32>
    %cst_16 = arith.constant dense<0.000000e+00> : vector<8x128xf32>
    %23 = tpu.matmul %20, %21, %cst_16 {dimension_numbers = #tpu.dot_dimension_numbers<[1], [0], [0], [1], [0, 0, 1, 1], [], []>} : vector<8x128xf32>, vector<128x128xf32>, vector<8x128xf32> -> vector<8x128xf32>
    %24 = vector.broadcast %22 : vector<1x128xf32> to vector<8x128xf32>
    %25 = arith.addf %23, %24 : vector<8x128xf32>
    %c0_17 = arith.constant 0 : index
    %c0_18 = arith.constant 0 : index
    %26 = vector.load %arg7[%c0_17, %c0_18] : memref<8x128xf32, #tpu.memory_space<vmem>>, vector<8x128xf32>
    tpu.vector_store %arg7[%c0_17, %c0_18], %25 {strides = array<i32>} : memref<8x128xf32, #tpu.memory_space<vmem>>, vector<8x128xf32>,
    return
  }
}

</mosaic_0001>

<llo_original>
// kernel: tpu_custom_call.1
$region0: #{tpu_custom_call.1}
  #allocation0 [shape = 'u32[]', space=smem, size = 0x4, offset = 0x4, fixed_abs, tag = 'smem constant byte address 0x4 - core index']
  #allocation1 [shape = 'u32[144,128]{1,0:T(1,128)}', space=vmem, size = 0x12000, scoped, tag = 'internal scratch']
  %s0 = inlined_call_operand.hbm [shape: f32[8,128], index: 0, kind: input, shape index: {}]
  %s1 = inlined_call_operand.hbm [shape: f32[128,128], index: 1, kind: input, shape index: {}]
  %s2 = inlined_call_operand.vmem [shape: f32[1,128], index: 2, kind: input, shape index: {}]
  %s3 = inlined_call_operand.hbm [shape: f32[128,128], index: 3, kind: input, shape index: {}]
  %s4 = inlined_call_operand.vmem [shape: f32[1,128], index: 4, kind: input, shape index: {}]
  %s5 = inlined_call_operand.hbm [shape: f32[128,128], index: 5, kind: input, shape index: {}]
  %s6 = inlined_call_operand.vmem [shape: f32[1,128], index: 6, kind: input, shape index: {}]
  %s7 = inlined_call_operand.hbm [shape: f32[8,128], index: 7, kind: output, shape index: {}]
  %s8 = sld [smem:[#allocation0]]
  $region54: #{tpu_custom_call.1} parent=0
    _
  %s10 = ssub.s32 1, %s8
  %s11 = scalar_select 0, %s10, %s8
  $region1: #{tpu_custom_call.1} parent=0
    #allocation2 [shape = 'u8[4096]{0}', space=vmem, size = 0x1000, scoped, tag = 'input window, operand 0, single buffered']
    #allocation3 [shape = 's32[1]{0}', space=sflag, size = 0x4, scoped, tag = 'scoped memory for tpu_custom_call.1']
    #allocation4 [shape = 's32[1]{0}', space=sflag, size = 0x4, scoped, tag = 'scoped memory for tpu_custom_call.1']
    #allocation5 [shape = 'u8[65536]{0}', space=vmem, size = 0x10000, scoped, tag = 'input window, operand 1, single buffered']
    #allocation6 [shape = 's32[1]{0}', space=sflag, size = 0x4, scoped, tag = 'scoped memory for tpu_custom_call.1']
    #allocation7 [shape = 'u8[65536]{0}', space=vmem, size = 0x10000, scoped, tag = 'input window, operand 3, single buffered']
    #allocation8 [shape = 'u8[65536]{0}', space=vmem, size = 0x10000, scoped, tag = 'input window, operand 5, single buffered']
    #allocation9 [shape = 's32[1]{0}', space=sflag, size = 0x4, scoped, tag = 'scoped memory for tpu_custom_call.1']
    #allocation10 [shape = 'u8[4096]{0}', space=vmem, size = 0x1000, scoped, tag = 'output window, operand 0, single buffered']
    %12 = vsyncpa [#allocation3], 0
    %13 = vsyncpa [#allocation6], 0
    %14 = vsyncpa [#allocation9], 0
    %15 = vsyncpa [#allocation4], 0
    // Predicated region
    $region2: #{tpu_custom_call.1} parent=1 // pred_check
      _
    $region3: #{tpu_custom_call.1} parent=1 // pred_check_branch
      %17 = sbr.rel (0) target = $region5
    $region4: #{tpu_custom_call.1} parent=1 // pred_region
      %s19 = ssub.s32 128, 128
      %20 = vsyncadd [#allocation3], %s19
      %s22 = sshll.u32 [#allocation2], 4
      %s23 = int_to_ptr.vmem [resolvable:$true] %s22
      %25 = dma.hbm_to_vmem [thread:$0]  %s0, 128, %s23, [#allocation3]
    $region5: #{tpu_custom_call.1} parent=1 // pred_fallthru
      _
    // Predicated region
    $region6: #{tpu_custom_call.1} parent=1 // pred_check
      _
    $region7: #{tpu_custom_call.1} parent=1 // pred_check_branch
      %27 = sbr.rel (0) target = $region9
    $region8: #{tpu_custom_call.1} parent=1 // pred_region
      %s29 = ssub.s32 2048, 2048
      %30 = vsyncadd [#allocation6], %s29
      %s31 = sshll.u32 [#allocation5], 4
      %s32 = int_to_ptr.vmem [resolvable:$true] %s31
      %37 = dma.hbm_to_vmem [thread:$0]  %s1, 2048, %s32, [#allocation6], 128, 128, 8
    $region9: #{tpu_custom_call.1} parent=1 // pred_fallthru
      _
    // Predicated region
    $region10: #{tpu_custom_call.1} parent=1 // pred_check
      _
    $region11: #{tpu_custom_call.1} parent=1 // pred_check_branch
      %39 = sbr.rel (0) target = $region13
    $region12: #{tpu_custom_call.1} parent=1 // pred_region
      _
    $region13: #{tpu_custom_call.1} parent=1 // pred_fallthru
      _
    // Predicated region
    $region14: #{tpu_custom_call.1} parent=1 // pred_check
      _
    $region15: #{tpu_custom_call.1} parent=1 // pred_check_branch
      %41 = sbr.rel (0) target = $region17
    $region16: #{tpu_custom_call.1} parent=1 // pred_region
      %s43 = ssub.s32 2048, 2048
      %44 = vsyncadd [#allocation6], %s43
      %s45 = sshll.u32 [#allocation7], 4
      %s46 = int_to_ptr.vmem [resolvable:$true] %s45
      %51 = dma.hbm_to_vmem [thread:$0]  %s3, 2048, %s46, [#allocation6], 128, 128, 8
    $region17: #{tpu_custom_call.1} parent=1 // pred_fallthru
      _
    // Predicated region
    $region18: #{tpu_custom_call.1} parent=1 // pred_check
      _
    $region19: #{tpu_custom_call.1} parent=1 // pred_check_branch
      %53 = sbr.rel (0) target = $region21
    $region20: #{tpu_custom_call.1} parent=1 // pred_region
      _
    $region21: #{tpu_custom_call.1} parent=1 // pred_fallthru
      _
    // Predicated region
    $region22: #{tpu_custom_call.1} parent=1 // pred_check
      _
    $region23: #{tpu_custom_call.1} parent=1 // pred_check_branch
      %55 = sbr.rel (0) target = $region25
    $region24: #{tpu_custom_call.1} parent=1 // pred_region
      %s57 = ssub.s32 2048, 2048
      %58 = vsyncadd [#allocation9], %s57
      %s59 = sshll.u32 [#allocation8], 4
      %s60 = int_to_ptr.vmem [resolvable:$true] %s59
      %65 = dma.hbm_to_vmem [thread:$0]  %s5, 2048, %s60, [#allocation9], 128, 128, 8
    $region25: #{tpu_custom_call.1} parent=1 // pred_fallthru
      _
    // Predicated region
    $region26: #{tpu_custom_call.1} parent=1 // pred_check
      _
    $region27: #{tpu_custom_call.1} parent=1 // pred_check_branch
      %67 = sbr.rel (0) target = $region29
    $region28: #{tpu_custom_call.1} parent=1 // pred_region
      _
    $region29: #{tpu_custom_call.1} parent=1 // pred_fallthru
      _
    // Predicated region
    $region30: #{tpu_custom_call.1} parent=1 // pred_check
      _
    $region31: #{tpu_custom_call.1} parent=1 // pred_check_branch
      %69 = sbr.rel (0) target = $region33
    $region32: #{tpu_custom_call.1} parent=1 // pred_region
      %70 = dma.done [#allocation3], 128
    $region33: #{tpu_custom_call.1} parent=1 // pred_fallthru
      _
    // Predicated region
    $region34: #{tpu_custom_call.1} parent=1 // pred_check
      _
    $region35: #{tpu_custom_call.1} parent=1 // pred_check_branch
      %72 = sbr.rel (0) target = $region37
    $region36: #{tpu_custom_call.1} parent=1 // pred_region
      %73 = dma.done [#allocation6], 2048
    $region37: #{tpu_custom_call.1} parent=1 // pred_fallthru
      _
    // Predicated region
    $region38: #{tpu_custom_call.1} parent=1 // pred_check
      _
    $region39: #{tpu_custom_call.1} parent=1 // pred_check_branch
      %75 = sbr.rel (0) target = $region41
    $region40: #{tpu_custom_call.1} parent=1 // pred_region
      %76 = dma.done [#allocation6], 2048
    $region41: #{tpu_custom_call.1} parent=1 // pred_fallthru
      _
    // Predicated region
    $region42: #{tpu_custom_call.1} parent=1 // pred_check
      _
    $region43: #{tpu_custom_call.1} parent=1 // pred_check_branch
      %78 = sbr.rel (0) target = $region45
    $region44: #{tpu_custom_call.1} parent=1 // pred_region
      %79 = dma.done [#allocation9], 2048
    $region45: #{tpu_custom_call.1} parent=1 // pred_fallthru
      _
    %v80 = vld [vmem:[#allocation2] sm:$0xff]
    %v81 = vld [vmem:[#allocation5] sm:$0xff]
    %v82 = vld [vmem:[#allocation5 + $0x8] sm:$0xff]
    %v83 = vld [vmem:[#allocation5 + $0x10] sm:$0xff]
    %v84 = vld [vmem:[#allocation5 + $0x18] sm:$0xff]
    %v85 = vld [vmem:[#allocation5 + $0x20] sm:$0xff]
    %v86 = vld [vmem:[#allocation5 + $0x28] sm:$0xff]
    %v87 = vld [vmem:[#allocation5 + $0x30] sm:$0xff]
    %v88 = vld [vmem:[#allocation5 + $0x38] sm:$0xff]
    %v89 = vld [vmem:[#allocation5 + $0x40] sm:$0xff]
    %v90 = vld [vmem:[#allocation5 + $0x48] sm:$0xff]
    %v91 = vld [vmem:[#allocation5 + $0x50] sm:$0xff]
    %v92 = vld [vmem:[#allocation5 + $0x58] sm:$0xff]
    %v93 = vld [vmem:[#allocation5 + $0x60] sm:$0xff]
    %v94 = vld [vmem:[#allocation5 + $0x68] sm:$0xff]
    %v95 = vld [vmem:[#allocation5 + $0x70] sm:$0xff]
    %v96 = vld [vmem:[#allocation5 + $0x78] sm:$0xff]
    %v97 = vld [vmem:[%s2] sm:$0x1]
    %v99 = vlaneseq
    %v100 = vshrl.u32 %v99, 7
    %v101 = vsub.s32 0, %v100
    %v102 = vrot.slane %v97, %v101
    %104 = vmatprep.subr.mxu0 0.0
    %105 = vmatpush1.msra.mxu0 %v81
    %106 = vmatprep.subr.mxu0 0.0
    %107 = vmatpush1.msra.mxu0 %v82
    %108 = vmatprep.subr.mxu0 0.0
    %109 = vmatpush1.msra.mxu0 %v83
    %110 = vmatprep.subr.mxu0 0.0
    %111 = vmatpush1.msra.mxu0 %v84
    %112 = vmatprep.subr.mxu0 0.0
    %113 = vmatpush1.msra.mxu0 %v85
    %114 = vmatprep.subr.mxu0 0.0
    %115 = vmatpush1.msra.mxu0 %v86
    %116 = vmatprep.subr.mxu0 0.0
    %117 = vmatpush1.msra.mxu0 %v87
    %118 = vmatprep.subr.mxu0 0.0
    %119 = vmatpush1.msra.mxu0 %v88
    %120 = vmatprep.subr.mxu0 0.0
    %121 = vmatpush1.msra.mxu0 %v89
    %122 = vmatprep.subr.mxu0 0.0
    %123 = vmatpush1.msra.mxu0 %v90
    %124 = vmatprep.subr.mxu0 0.0
    %125 = vmatpush1.msra.mxu0 %v91
    %126 = vmatprep.subr.mxu0 0.0
    %127 = vmatpush1.msra.mxu0 %v92
    %128 = vmatprep.subr.mxu0 0.0
    %129 = vmatpush1.msra.mxu0 %v93
    %130 = vmatprep.subr.mxu0 0.0
    %131 = vmatpush1.msra.mxu0 %v94
    %132 = vmatprep.subr.mxu0 0.0
    %133 = vmatpush1.msra.mxu0 %v95
    %134 = vmatprep.subr.mxu0 0.0
    %135 = vmatpush1.msra.mxu0 %v96
    %136 = vmatprep.subr.mxu0 0.0
    %137 = vmatpush1.msra.mxu0 0.0
    %138 = vmatprep.subr.mxu0 0.0
    %139 = vmatpush1.msra.mxu0 0.0
    %140 = vmatprep.subr.mxu0 0.0
    %141 = vmatpush1.msra.mxu0 0.0
    %142 = vmatprep.subr.mxu0 0.0
    %143 = vmatpush1.msra.mxu0 0.0
    %144 = vmatprep.subr.mxu0 0.0
    %145 = vmatpush1.msra.mxu0 0.0
    %146 = vmatprep.subr.mxu0 0.0
    %147 = vmatpush1.msra.mxu0 0.0
    %148 = vmatprep.subr.mxu0 0.0
    %149 = vmatpush1.msra.mxu0 0.0
    %150 = vmatprep.subr.mxu0 0.0
    %151 = vmatpush1.msra.mxu0 0.0
    %152 = vmatprep.subr.mxu0 0.0
    %153 = vmatpush1.msra.mxu0 0.0
    %154 = vmatprep.subr.mxu0 0.0
    %155 = vmatpush1.msra.mxu0 0.0
    %156 = vmatprep.subr.mxu0 0.0
    %157 = vmatpush1.msra.mxu0 0.0
    %158 = vmatprep.subr.mxu0 0.0
    %159 = vmatpush1.msra.mxu0 0.0
    %160 = vmatprep.subr.mxu0 0.0
    %161 = vmatpush1.msra.mxu0 0.0
    %162 = vmatprep.subr.mxu0 0.0
    %163 = vmatpush1.msra.mxu0 0.0
    %164 = vmatprep.subr.mxu0 0.0
    %165 = vmatpush1.msra.mxu0 0.0
    %166 = vmatprep.subr.mxu0 0.0
    %167 = vmatpush1.msra.mxu0 0.0
    %168 = vmatprep.mubr.f32.mxu0 0.0
    %169 = vmatmul.mubr.f32.gmra.mrb[0].mxu0 %v80
    %v170 = vpop.f32.mrb[0].mxu0
    %v171 = vadd.f32 %v102, %v170
    %v172 = vpop.f32.mrb[0].mxu0
    %173 = vdwg.mxu0
    %v174 = vxor.u32 %v171, 2147483648
    %v175 = vmul.f32 %v174, 1.442695
    %v176 = vpow.pop %v175
    %v177 = vadd.f32 %v176, 1.0
    %v178 = vrcp.pop %v177
    %v179 = vmul.f32 1.0, %v178
    %v180 = vld [vmem:[#allocation7] sm:$0xff]
    %v181 = vld [vmem:[#allocation7 + $0x8] sm:$0xff]
    %v182 = vld [vmem:[#allocation7 + $0x10] sm:$0xff]
    %v183 = vld [vmem:[#allocation7 + $0x18] sm:$0xff]
    %v184 = vld [vmem:[#allocation7 + $0x20] sm:$0xff]
    %v185 = vld [vmem:[#allocation7 + $0x28] sm:$0xff]
    %v186 = vld [vmem:[#allocation7 + $0x30] sm:$0xff]
    %v187 = vld [vmem:[#allocation7 + $0x38] sm:$0xff]
    %v188 = vld [vmem:[#allocation7 + $0x40] sm:$0xff]
    %v189 = vld [vmem:[#allocation7 + $0x48] sm:$0xff]
    %v190 = vld [vmem:[#allocation7 + $0x50] sm:$0xff]
    %v191 = vld [vmem:[#allocation7 + $0x58] sm:$0xff]
    %v192 = vld [vmem:[#allocation7 + $0x60] sm:$0xff]
    %v193 = vld [vmem:[#allocation7 + $0x68] sm:$0xff]
    %v194 = vld [vmem:[#allocation7 + $0x70] sm:$0xff]
    %v195 = vld [vmem:[#allocation7 + $0x78] sm:$0xff]
    %v196 = vld [vmem:[%s4] sm:$0x1]
    %v198 = vlaneseq
    %v199 = vshrl.u32 %v198, 7
    %v200 = vsub.s32 0, %v199
    %v201 = vrot.slane %v196, %v200
    %203 = vmatprep.subr.mxu0 0.0
    %204 = vmatpush1.msra.mxu0 %v180
    %205 = vmatprep.subr.mxu0 0.0
    %206 = vmatpush1.msra.mxu0 %v181
    %207 = vmatprep.subr.mxu0 0.0
    %208 = vmatpush1.msra.mxu0 %v182
    %209 = vmatprep.subr.mxu0 0.0
    %210 = vmatpush1.msra.mxu0 %v183
    %211 = vmatprep.subr.mxu0 0.0
    %212 = vmatpush1.msra.mxu0 %v184
    %213 = vmatprep.subr.mxu0 0.0
    %214 = vmatpush1.msra.mxu0 %v185
    %215 = vmatprep.subr.mxu0 0.0
    %216 = vmatpush1.msra.mxu0 %v186
    %217 = vmatprep.subr.mxu0 0.0
    %218 = vmatpush1.msra.mxu0 %v187
    %219 = vmatprep.subr.mxu0 0.0
    %220 = vmatpush1.msra.mxu0 %v188
    %221 = vmatprep.subr.mxu0 0.0
    %222 = vmatpush1.msra.mxu0 %v189
    %223 = vmatprep.subr.mxu0 0.0
    %224 = vmatpush1.msra.mxu0 %v190
    %225 = vmatprep.subr.mxu0 0.0
    %226 = vmatpush1.msra.mxu0 %v191
    %227 = vmatprep.subr.mxu0 0.0
    %228 = vmatpush1.msra.mxu0 %v192
    %229 = vmatprep.subr.mxu0 0.0
    %230 = vmatpush1.msra.mxu0 %v193
    %231 = vmatprep.subr.mxu0 0.0
    %232 = vmatpush1.msra.mxu0 %v194
    %233 = vmatprep.subr.mxu0 0.0
    %234 = vmatpush1.msra.mxu0 %v195
    %235 = vmatprep.subr.mxu0 0.0
    %236 = vmatpush1.msra.mxu0 0.0
    %237 = vmatprep.subr.mxu0 0.0
    %238 = vmatpush1.msra.mxu0 0.0
    %239 = vmatprep.subr.mxu0 0.0
    %240 = vmatpush1.msra.mxu0 0.0
    %241 = vmatprep.subr.mxu0 0.0
    %242 = vmatpush1.msra.mxu0 0.0
    %243 = vmatprep.subr.mxu0 0.0
    %244 = vmatpush1.msra.mxu0 0.0
    %245 = vmatprep.subr.mxu0 0.0
    %246 = vmatpush1.msra.mxu0 0.0
    %247 = vmatprep.subr.mxu0 0.0
    %248 = vmatpush1.msra.mxu0 0.0
    %249 = vmatprep.subr.mxu0 0.0
    %250 = vmatpush1.msra.mxu0 0.0
    %251 = vmatprep.subr.mxu0 0.0
    %252 = vmatpush1.msra.mxu0 0.0
    %253 = vmatprep.subr.mxu0 0.0
    %254 = vmatpush1.msra.mxu0 0.0
    %255 = vmatprep.subr.mxu0 0.0
    %256 = vmatpush1.msra.mxu0 0.0
    %257 = vmatprep.subr.mxu0 0.0
    %258 = vmatpush1.msra.mxu0 0.0
    %259 = vmatprep.subr.mxu0 0.0
    %260 = vmatpush1.msra.mxu0 0.0
    %261 = vmatprep.subr.mxu0 0.0
    %262 = vmatpush1.msra.mxu0 0.0
    %263 = vmatprep.subr.mxu0 0.0
    %264 = vmatpush1.msra.mxu0 0.0
    %265 = vmatprep.subr.mxu0 0.0
    %266 = vmatpush1.msra.mxu0 0.0
    %267 = vmatprep.mubr.f32.mxu0 0.0
    %268 = vmatmul.mubr.f32.gmra.mrb[0].mxu0 %v179
    %v269 = vpop.f32.mrb[0].mxu0
    %v270 = vadd.f32 %v201, %v269
    %v271 = vpop.f32.mrb[0].mxu0
    %272 = vdwg.mxu0
    %v273 = vxor.u32 %v270, 2147483648
    %v274 = vmul.f32 %v273, 1.442695
    %v275 = vpow.pop %v274
    %v276 = vadd.f32 %v275, 1.0
    %v277 = vrcp.pop %v276
    %v278 = vmul.f32 1.0, %v277
    %v279 = vld [vmem:[#allocation8] sm:$0xff]
    %v280 = vld [vmem:[#allocation8 + $0x8] sm:$0xff]
    %v281 = vld [vmem:[#allocation8 + $0x10] sm:$0xff]
    %v282 = vld [vmem:[#allocation8 + $0x18] sm:$0xff]
    %v283 = vld [vmem:[#allocation8 + $0x20] sm:$0xff]
    %v284 = vld [vmem:[#allocation8 + $0x28] sm:$0xff]
    %v285 = vld [vmem:[#allocation8 + $0x30] sm:$0xff]
    %v286 = vld [vmem:[#allocation8 + $0x38] sm:$0xff]
    %v287 = vld [vmem:[#allocation8 + $0x40] sm:$0xff]
    %v288 = vld [vmem:[#allocation8 + $0x48] sm:$0xff]
    %v289 = vld [vmem:[#allocation8 + $0x50] sm:$0xff]
    %v290 = vld [vmem:[#allocation8 + $0x58] sm:$0xff]
    %v291 = vld [vmem:[#allocation8 + $0x60] sm:$0xff]
    %v292 = vld [vmem:[#allocation8 + $0x68] sm:$0xff]
    %v293 = vld [vmem:[#allocation8 + $0x70] sm:$0xff]
    %v294 = vld [vmem:[#allocation8 + $0x78] sm:$0xff]
    %v295 = vld [vmem:[%s6] sm:$0x1]
    %v297 = vlaneseq
    %v298 = vshrl.u32 %v297, 7
    %v299 = vsub.s32 0, %v298
    %v300 = vrot.slane %v295, %v299
    %302 = vmatprep.subr.mxu0 0.0
    %303 = vmatpush1.msra.mxu0 %v279
    %304 = vmatprep.subr.mxu0 0.0
    %305 = vmatpush1.msra.mxu0 %v280
    %306 = vmatprep.subr.mxu0 0.0
    %307 = vmatpush1.msra.mxu0 %v281
    %308 = vmatprep.subr.mxu0 0.0
    %309 = vmatpush1.msra.mxu0 %v282
    %310 = vmatprep.subr.mxu0 0.0
    %311 = vmatpush1.msra.mxu0 %v283
    %312 = vmatprep.subr.mxu0 0.0
    %313 = vmatpush1.msra.mxu0 %v284
    %314 = vmatprep.subr.mxu0 0.0
    %315 = vmatpush1.msra.mxu0 %v285
    %316 = vmatprep.subr.mxu0 0.0
    %317 = vmatpush1.msra.mxu0 %v286
    %318 = vmatprep.subr.mxu0 0.0
    %319 = vmatpush1.msra.mxu0 %v287
    %320 = vmatprep.subr.mxu0 0.0
    %321 = vmatpush1.msra.mxu0 %v288
    %322 = vmatprep.subr.mxu0 0.0
    %323 = vmatpush1.msra.mxu0 %v289
    %324 = vmatprep.subr.mxu0 0.0
    %325 = vmatpush1.msra.mxu0 %v290
    %326 = vmatprep.subr.mxu0 0.0
    %327 = vmatpush1.msra.mxu0 %v291
    %328 = vmatprep.subr.mxu0 0.0
    %329 = vmatpush1.msra.mxu0 %v292
    %330 = vmatprep.subr.mxu0 0.0
    %331 = vmatpush1.msra.mxu0 %v293
    %332 = vmatprep.subr.mxu0 0.0
    %333 = vmatpush1.msra.mxu0 %v294
    %334 = vmatprep.subr.mxu0 0.0
    %335 = vmatpush1.msra.mxu0 0.0
    %336 = vmatprep.subr.mxu0 0.0
    %337 = vmatpush1.msra.mxu0 0.0
    %338 = vmatprep.subr.mxu0 0.0
    %339 = vmatpush1.msra.mxu0 0.0
    %340 = vmatprep.subr.mxu0 0.0
    %341 = vmatpush1.msra.mxu0 0.0
    %342 = vmatprep.subr.mxu0 0.0
    %343 = vmatpush1.msra.mxu0 0.0
    %344 = vmatprep.subr.mxu0 0.0
    %345 = vmatpush1.msra.mxu0 0.0
    %346 = vmatprep.subr.mxu0 0.0
    %347 = vmatpush1.msra.mxu0 0.0
    %348 = vmatprep.subr.mxu0 0.0
    %349 = vmatpush1.msra.mxu0 0.0
    %350 = vmatprep.subr.mxu0 0.0
    %351 = vmatpush1.msra.mxu0 0.0
    %352 = vmatprep.subr.mxu0 0.0
    %353 = vmatpush1.msra.mxu0 0.0
    %354 = vmatprep.subr.mxu0 0.0
    %355 = vmatpush1.msra.mxu0 0.0
    %356 = vmatprep.subr.mxu0 0.0
    %357 = vmatpush1.msra.mxu0 0.0
    %358 = vmatprep.subr.mxu0 0.0
    %359 = vmatpush1.msra.mxu0 0.0
    %360 = vmatprep.subr.mxu0 0.0
    %361 = vmatpush1.msra.mxu0 0.0
    %362 = vmatprep.subr.mxu0 0.0
    %363 = vmatpush1.msra.mxu0 0.0
    %364 = vmatprep.subr.mxu0 0.0
    %365 = vmatpush1.msra.mxu0 0.0
    %366 = vmatprep.mubr.f32.mxu0 0.0
    %367 = vmatmul.mubr.f32.gmra.mrb[0].mxu0 %v278
    %v368 = vpop.f32.mrb[0].mxu0
    %v369 = vadd.f32 %v300, %v368
    %v370 = vpop.f32.mrb[0].mxu0
    %371 = vdwg.mxu0
    %372 = vst [vmem:[#allocation10] sm:$0xff] %v369
    // Predicated region
    $region46: #{tpu_custom_call.1} parent=1 // pred_check
      _
    $region47: #{tpu_custom_call.1} parent=1 // pred_check_branch
      %374 = sbr.rel (0) target = $region49
    $region48: #{tpu_custom_call.1} parent=1 // pred_region
      %s376 = ssub.s32 128, 128
      %377 = vsyncadd [#allocation4], %s376
      %s379 = sshll.u32 [#allocation10], 4
      %s380 = int_to_ptr.vmem [resolvable:$true] %s379
      %382 = dma.vmem_to_hbm [thread:$0]  %s380, 128, %s7, [#allocation4]
    $region49: #{tpu_custom_call.1} parent=1 // pred_fallthru
      _
    // Predicated region
    $region50: #{tpu_custom_call.1} parent=1 // pred_check
      _
    $region51: #{tpu_custom_call.1} parent=1 // pred_check_branch
      %384 = sbr.rel (0) target = $region53
    $region52: #{tpu_custom_call.1} parent=1 // pred_region
      %385 = dma.done [#allocation4], 128
    $region53: #{tpu_custom_call.1} parent=1 // pred_fallthru
      _
    %386 = vsyncpa [#allocation3], 1
    %387 = vsyncpa [#allocation6], 1
    %388 = vsyncpa [#allocation9], 1
    %389 = vsyncpa [#allocation4], 1

</llo_original>
